<compile_context>
chip_gen: v5e
topology: v5e:2x2
jax: 0.10.0
libtpu: 0.0.40
codegen_flags: <defaults>
</compile_context>

<pallas_src>
import math

import jax
import jax.numpy as jnp
from jax.experimental import pallas as pl
from jax.experimental.pallas import tpu as pltpu


def _ceil_to(v, m):
    return ((v + m - 1) // m) * m


def _encoder_kernel(x_ref, rw_ref, wx_ref, wr_ref, b1_ref, fl1_ref,
                    w2_ref, b2_ref, fl2_ref, out_ref):
    # In-kernel f32 -> bf16 cast (VPU, rides otherwise-idle slots); f32 MXU accumulation.
    xb = x_ref[...].astype(wx_ref.dtype)
    rb = rw_ref[...].astype(wr_ref.dtype)
    # Stage 1: fused x-branch Linear + BN-folded PE layer-1 as two block-diagonal dots.
    z = jnp.dot(xb, wx_ref[...], preferred_element_type=jnp.float32)
    z = z + jnp.dot(rb, wr_ref[...], preferred_element_type=jnp.float32)
    z = z + b1_ref[...]
    # Selective ReLU: floor 0.0 on PE-hidden columns, -1e30 (pass-through) on h columns.
    z = jnp.maximum(z, fl1_ref[...])
    # Stage 2: h columns pass through identity blocks; PE-hidden through W2.
    # NOTE: with out_dtype=bf16 the bf16 round-trip of h here is exactly equivalent to
    # the final output cast; if out_dtype were f32 this would lose h precision to bf16.
    y = jnp.dot(z.astype(w2_ref.dtype), w2_ref[...], preferred_element_type=jnp.float32)
    y = y + b2_ref[...]
    y = jnp.maximum(y, fl2_ref[...])
    out_ref[...] = y.astype(out_ref.dtype)


def hetero_pe_node_encoder(x, rw_landing, params, *, tile_n=16384,
                           mxu_dtype=jnp.bfloat16, out_dtype=jnp.bfloat16,
                           num_cores=1):
    """x: [N, dim_in] node features; rw_landing: [N, K] RWSE stats. Returns [N, dim_emb].

    num_cores: set to 2 on v7x so the 'parallel' grid axis splits evenly across its
    two TensorCores; leave at 1 on v5e/v6e (single TC) to keep tiles as big as possible.
    """
    N, dim_in = x.shape
    K = rw_landing.shape[1]
    wx, bx = params["wx"], params["bx"]          # [dim_in, dim_h], [dim_h]
    w1, b1 = params["w1"], params["b1"]          # [K, 2*dim_pe], [2*dim_pe]
    w2, b2 = params["w2"], params["b2"]          # [2*dim_pe, dim_pe], [dim_pe]
    gamma, beta, eps = params["bn_gamma"], params["bn_beta"], params["bn_eps"]

    dim_h = wx.shape[1]
    dim_pe = w2.shape[1]
    dim_mid = w1.shape[1]                        # 2*dim_pe
    dim_emb = dim_h + dim_pe

    # ---- BatchNorm1d (training-mode batch stats) folded into the first Linear. ----
    # TODO(synk): eval-mode BatchNorm (running stats) folds identically with stored
    # running_mean/var; only the training-stats path is implemented here.
    # TODO(synk): this stats pass re-reads rw from HBM (~K/(dim_in+K) of input traffic);
    # fuse it as a leading 'arbitrary' grid axis if this encoder is on the critical path.
    rw32 = rw_landing.astype(jnp.float32)
    mean = jnp.mean(rw32, axis=0)
    var = jnp.var(rw32, axis=0)                  # biased, matches BatchNorm1d training mode
    bn_scale = gamma / jnp.sqrt(var + eps)
    bn_shift = beta - mean * bn_scale
    w1p = bn_scale[:, None] * w1                 # BN(rw) @ W1 + b1 == rw @ W1' + b1'
    b1p = bn_shift @ w1 + b1

    # ---- Per-node fused (block-diagonal) weights; PACK nodes per 128-lane row. ----
    d_mid_node = dim_h + dim_mid                 # fused per-node stage-1 output width
    pack = 128 // math.gcd(dim_emb, 128)         # nodes per lane-dense output row
    if pack > 16:
        pack = 1  # TODO(synk): odd dim_emb needs pack>16; fall back to masked stores.

    pd_in_x = pack * dim_in
    pd_in_r = pack * K
    pd_mid = pack * d_mid_node
    pd_emb = pack * dim_emb

    f32 = jnp.float32
    w_bigX = jnp.zeros((pd_in_x, pd_mid), f32)
    w_bigR = jnp.zeros((pd_in_r, pd_mid), f32)
    w_big2 = jnp.zeros((pd_mid, pd_emb), f32)
    eye_h = jnp.eye(dim_h, dtype=f32)
    for i in range(pack):
        c0 = i * d_mid_node
        w_bigX = w_bigX.at[i * dim_in:(i + 1) * dim_in, c0:c0 + dim_h].set(wx.astype(f32))
        w_bigR = w_bigR.at[i * K:(i + 1) * K, c0 + dim_h:c0 + d_mid_node].set(w1p.astype(f32))
        w_big2 = w_big2.at[c0:c0 + dim_h, i * dim_emb:i * dim_emb + dim_h].set(eye_h)
        w_big2 = w_big2.at[c0 + dim_h:c0 + d_mid_node,
                           i * dim_emb + dim_h:(i + 1) * dim_emb].set(w2.astype(f32))

    b_node1 = jnp.concatenate([bx.astype(f32), b1p.astype(f32)])
    fl_node1 = jnp.concatenate([jnp.full((dim_h,), -1e30, f32), jnp.zeros((dim_mid,), f32)])
    b_node2 = jnp.concatenate([jnp.zeros((dim_h,), f32), b2.astype(f32)])
    fl_node2 = jnp.concatenate([jnp.full((dim_h,), -1e30, f32), jnp.zeros((dim_pe,), f32)])
    b_big1 = jnp.tile(b_node1, pack).reshape(1, pd_mid)
    fl_big1 = jnp.tile(fl_node1, pack).reshape(1, pd_mid)
    b_big2 = jnp.tile(b_node2, pack).reshape(1, pd_emb)
    fl_big2 = jnp.tile(fl_node2, pack).reshape(1, pd_emb)

    # ---- Minimal node padding (64-node quantum only), free row-major packing. ----
    row_quant = 16                               # bf16 sublane quantum on packed rows
    node_quant = pack * row_quant
    n_pad = _ceil_to(N, node_quant)
    if n_pad != N:
        x_p = jnp.pad(x, ((0, n_pad - N), (0, 0)))
        rw_p = jnp.pad(rw_landing, ((0, n_pad - N), (0, 0)))
    else:
        x_p, rw_p = x, rw_landing
    R = n_pad // pack
    x_packed = x_p.reshape(R, pd_in_x)           # row-major merge => free relayout, f32
    rw_packed = rw_p.reshape(R, pd_in_r)

    # ---- Node-axis tile: big tiles, partial last block, explicit VMEM budget. ----
    tile_rows = max(row_quant, (int(tile_n) // pack // row_quant) * row_quant)
    tile_rows = min(tile_rows, 8192)             # ~3.8 KB VMEM / packed row => <=32 MiB tiles
    tile_rows = min(tile_rows, R)
    steps = pl.cdiv(R, tile_rows)
    if num_cores > 1 and steps > 1 and steps % num_cores:
        # v7x: keep the 'parallel' axis evenly divisible across the 2 TensorCores.
        steps = _ceil_to(steps, num_cores)
        tile_rows = max(row_quant, _ceil_to(pl.cdiv(R, steps), row_quant))
        steps = pl.cdiv(R, tile_rows)

    # Double-buffered f32 inputs + bf16 outputs + in-kernel intermediates (per packed row).
    vmem_per_row = (2 * (pd_in_x + pd_in_r) * 4 + 2 * pd_emb * 2
                    + (pd_in_x + pd_in_r) * 2 + pd_mid * 6 + pd_emb * 4)
    weight_bytes = 2 * 2 * (w_bigX.size + w_bigR.size + w_big2.size) + 4 * 4 * (pd_mid + pd_emb)
    vmem_limit = int(min(60 * 2**20,
                         max(32 * 2**20, tile_rows * vmem_per_row + weight_bytes + 2 * 2**20)))

    cost = pl.CostEstimate(
        flops=int(2 * R * (pd_in_x * pd_mid + pd_in_r * pd_mid + pd_mid * pd_emb)),
        transcendentals=0,
        bytes_accessed=int(R * (pd_in_x + pd_in_r) * 4
                           + R * pd_emb * jnp.dtype(out_dtype).itemsize
                           + 2 * (w_bigX.size + w_bigR.size + w_big2.size)),
    )

    node_map = lambda i: (i, 0)
    const_map = lambda i: (0, 0)

    out = pl.pallas_call(
        _encoder_kernel,
        out_shape=jax.ShapeDtypeStruct((R, pd_emb), out_dtype),
        grid_spec=pltpu.PrefetchScalarGridSpec(
            num_scalar_prefetch=0,
            grid=(steps,),
            in_specs=[
                pl.BlockSpec((tile_rows, pd_in_x), node_map),   # packed x   (f32 stream)
                pl.BlockSpec((tile_rows, pd_in_r), node_map),   # packed rw  (f32 stream)
                pl.BlockSpec((pd_in_x, pd_mid), const_map),     # stage-1 W, x branch
                pl.BlockSpec((pd_in_r, pd_mid), const_map),     # stage-1 W, rw branch (BN folded)
                pl.BlockSpec((1, pd_mid), const_map),           # stage-1 bias
                pl.BlockSpec((1, pd_mid), const_map),           # stage-1 relu floor
                pl.BlockSpec((pd_mid, pd_emb), const_map),      # stage-2 W (identity | W2)
                pl.BlockSpec((1, pd_emb), const_map),           # stage-2 bias
                pl.BlockSpec((1, pd_emb), const_map),           # stage-2 relu floor
            ],
            out_specs=pl.BlockSpec((tile_rows, pd_emb), node_map),
        ),
        compiler_params=pltpu.CompilerParams(
            dimension_semantics=("parallel",),
            vmem_limit_bytes=vmem_limit),
        cost_estimate=cost,
    )(x_packed, rw_packed,
      w_bigX.astype(mxu_dtype), w_bigR.astype(mxu_dtype), b_big1, fl_big1,
      w_big2.astype(mxu_dtype), b_big2, fl_big2)

    # Unpack back to [N, dim_emb] (row-major reshape, free) and drop padding rows.
    return out.reshape(n_pad, dim_emb)[:N]


# ----------------------------- references for testing -----------------------------

def _reference_f32(x, rw, params):
    """Plain f32 reference with explicit BatchNorm (validates BN fold + fusion)."""
    mean = jnp.mean(rw, axis=0)
    var = jnp.var(rw, axis=0)
    pe = (rw - mean) / jnp.sqrt(var + params["bn_eps"]) * params["bn_gamma"] + params["bn_beta"]
    pe = jnp.maximum(pe @ params["w1"] + params["b1"], 0.0)
    pe = jnp.maximum(pe @ params["w2"] + params["b2"], 0.0)
    h = x @ params["wx"] + params["bx"]
    return jnp.concatenate([h, pe], axis=-1)


def _reference_mixed(x, rw, params, mxu_dtype=jnp.bfloat16):
    """Reference mirroring the kernel's precision (bf16 MXU operands, f32 accumulation)."""
    f32 = jnp.float32
    q = lambda a: a.astype(mxu_dtype).astype(f32)
    mean = jnp.mean(rw.astype(f32), axis=0)
    var = jnp.var(rw.astype(f32), axis=0)
    scale = params["bn_gamma"] / jnp.sqrt(var + params["bn_eps"])
    shift = params["bn_beta"] - mean * scale
    w1p = q(scale[:, None] * params["w1"])
    b1p = shift @ params["w1"] + params["b1"]
    h = q(x) @ q(params["wx"]) + params["bx"]
    g = jnp.maximum(q(rw) @ w1p + b1p, 0.0)
    pe = jnp.maximum(q(g) @ q(params["w2"]) + params["b2"], 0.0)
    out = jnp.concatenate([h, pe], axis=-1)
    return out.astype(mxu_dtype).astype(f32)


if __name__ == "__main__":
    dim_in = 32      # raw node feature dim
    dim_emb = 32     # final embedding dim
    dim_pe = 16      # positional-encoding dim
    dim_h = dim_emb - dim_pe
    K = 8            # num_rw_steps = len(posenc_Hetero_RWSE.kernel.times)

    key = jax.random.PRNGKey(0)
    ks = jax.random.split(key, 12)
    params = {
        "wx": jax.random.normal(ks[4], (dim_in, dim_h), jnp.float32) * 0.1,
        "bx": jax.random.normal(ks[5], (dim_h,), jnp.float32) * 0.01,
        "w1": jax.random.normal(ks[6], (K, 2 * dim_pe), jnp.float32) * 0.1,
        "b1": jax.random.normal(ks[7], (2 * dim_pe,), jnp.float32) * 0.01,
        "w2": jax.random.normal(ks[8], (2 * dim_pe, dim_pe), jnp.float32) * 0.1,
        "b2": jax.random.normal(ks[9], (dim_pe,), jnp.float32) * 0.01,
        "bn_gamma": jnp.ones((K,), jnp.float32),
        "bn_beta": jnp.zeros((K,), jnp.float32),
        "bn_eps": 1e-5,
    }

    # Test 1: small N, exercises the pad-to-quantum path (single grid step).
    N1 = 200
    x1 = jax.random.normal(ks[0], (N1, dim_in), jnp.float32)
    rw1 = jax.random.uniform(ks[1], (N1, K), jnp.float32)
    out1 = jax.block_until_ready(hetero_pe_node_encoder(x1, rw1, params))
    assert out1.shape == (N1, dim_emb)
    out1_f = out1.astype(jnp.float32)
    assert jnp.allclose(out1_f, _reference_mixed(x1, rw1, params), atol=2e-2, rtol=2e-2), \
        "test1 mismatch vs mixed-precision reference"
    assert jnp.allclose(out1_f, _reference_f32(x1, rw1, params), atol=1e-1, rtol=1e-1), \
        "test1 mismatch vs f32 reference"

    # Test 2: multi-step grid with a partial last block (tile_n forced small).
    N2 = 5000
    x2 = jax.random.normal(ks[2], (N2, dim_in), jnp.float32)
    rw2 = jax.random.uniform(ks[3], (N2, K), jnp.float32)
    out2 = jax.block_until_ready(hetero_pe_node_encoder(x2, rw2, params, tile_n=4096))
    assert out2.shape == (N2, dim_emb)
    out2_f = out2.astype(jnp.float32)
    assert jnp.allclose(out2_f, _reference_mixed(x2, rw2, params), atol=2e-2, rtol=2e-2), \
        "test2 mismatch vs mixed-precision reference"
    assert jnp.allclose(out2_f, _reference_f32(x2, rw2, params), atol=1e-1, rtol=1e-1), \
        "test2 mismatch vs f32 reference"

    # TODO(synk): hetero ModuleDict branch (per-node-type linear_x) and on-the-fly
    # get_rw_landing_probs (sparse random walk over edge_index) are graph-structure
    # dependent glue; only the dense per-node encoder hot path is implemented in Pallas.
    print("KERNEL_OK")
</pallas_src>

<mosaic_0001>
module attributes {stable_mosaic.version = 11 : i64} {
  func.func @_encoder_kernel(%arg0: i32, %arg1: memref<64x128xf32, #tpu.memory_space<vmem>>, %arg2: memref<64x32xf32, #tpu.memory_space<vmem>>, %arg3: memref<128x192xbf16, #tpu.memory_space<vmem>>, %arg4: memref<32x192xbf16, #tpu.memory_space<vmem>>, %arg5: memref<1x192xf32, #tpu.memory_space<vmem>>, %arg6: memref<1x192xf32, #tpu.memory_space<vmem>>, %arg7: memref<192x128xbf16, #tpu.memory_space<vmem>>, %arg8: memref<1x128xf32, #tpu.memory_space<vmem>>, %arg9: memref<1x128xf32, #tpu.memory_space<vmem>>, %arg10: memref<64x128xbf16, #tpu.memory_space<vmem>>) attributes {dimension_semantics = [#tpu.dimension_semantics<parallel>], iteration_bounds = array<i64: 1>, scalar_prefetch = 0 : i64, scratch_operands = 0 : i64, tpu.core_type = #tpu.core_type<tc>, window_params = [{transform_indices = @transform_0, window_bounds = array<i64: 64, 128>}, {transform_indices = @transform_1, window_bounds = array<i64: 64, 32>}, {pipeline_mode = #tpu.pipeline_mode<synchronous>, transform_indices = @transform_2, window_bounds = array<i64: 128, 192>}, {pipeline_mode = #tpu.pipeline_mode<synchronous>, transform_indices = @transform_3, window_bounds = array<i64: 32, 192>}, {pipeline_mode = #tpu.pipeline_mode<synchronous>, transform_indices = @transform_4, window_bounds = array<i64: 1, 192>}, {pipeline_mode = #tpu.pipeline_mode<synchronous>, transform_indices = @transform_5, window_bounds = array<i64: 1, 192>}, {pipeline_mode = #tpu.pipeline_mode<synchronous>, transform_indices = @transform_6, window_bounds = array<i64: 192, 128>}, {pipeline_mode = #tpu.pipeline_mode<synchronous>, transform_indices = @transform_7, window_bounds = array<i64: 1, 128>}, {pipeline_mode = #tpu.pipeline_mode<synchronous>, transform_indices = @transform_8, window_bounds = array<i64: 1, 128>}, {transform_indices = @transform_9, window_bounds = array<i64: 64, 128>}]} {
    %c0 = arith.constant 0 : index
    %c0_0 = arith.constant 0 : index
    %0 = vector.load %arg1[%c0, %c0_0] : memref<64x128xf32, #tpu.memory_space<vmem>>, vector<64x128xf32>
    %1 = arith.truncf %0 : vector<64x128xf32> to vector<64x128xbf16>
    %c0_1 = arith.constant 0 : index
    %c0_2 = arith.constant 0 : index
    %2 = vector.load %arg2[%c0_1, %c0_2] : memref<64x32xf32, #tpu.memory_space<vmem>>, vector<64x32xf32>
    %3 = arith.truncf %2 : vector<64x32xf32> to vector<64x32xbf16>
    %c0_3 = arith.constant 0 : index
    %c0_4 = arith.constant 0 : index
    %4 = vector.load %arg3[%c0_3, %c0_4] : memref<128x192xbf16, #tpu.memory_space<vmem>>, vector<128x192xbf16>
    %cst = arith.constant dense<0.000000e+00> : vector<64x192xf32>
    %5 = tpu.matmul %1, %4, %cst {dimension_numbers = #tpu.dot_dimension_numbers<[1], [0], [0], [1], [0, 0, 1, 1], [], []>} : vector<64x128xbf16>, vector<128x192xbf16>, vector<64x192xf32> -> vector<64x192xf32>
    %c0_5 = arith.constant 0 : index
    %c0_6 = arith.constant 0 : index
    %6 = vector.load %arg4[%c0_5, %c0_6] : memref<32x192xbf16, #tpu.memory_space<vmem>>, vector<32x192xbf16>
    %cst_7 = arith.constant dense<0.000000e+00> : vector<64x192xf32>
    %7 = tpu.matmul %3, %6, %cst_7 {dimension_numbers = #tpu.dot_dimension_numbers<[1], [0], [0], [1], [0, 0, 1, 1], [], []>} : vector<64x32xbf16>, vector<32x192xbf16>, vector<64x192xf32> -> vector<64x192xf32>
    %8 = arith.addf %5, %7 : vector<64x192xf32>
    %c0_8 = arith.constant 0 : index
    %c0_9 = arith.constant 0 : index
    %9 = vector.load %arg5[%c0_8, %c0_9] : memref<1x192xf32, #tpu.memory_space<vmem>>, vector<1x192xf32>
    %10 = vector.broadcast %9 : vector<1x192xf32> to vector<64x192xf32>
    %11 = arith.addf %8, %10 : vector<64x192xf32>
    %c0_10 = arith.constant 0 : index
    %c0_11 = arith.constant 0 : index
    %12 = vector.load %arg6[%c0_10, %c0_11] : memref<1x192xf32, #tpu.memory_space<vmem>>, vector<1x192xf32>
    %13 = vector.broadcast %12 : vector<1x192xf32> to vector<64x192xf32>
    %14 = arith.maximumf %11, %13 : vector<64x192xf32>
    %15 = arith.truncf %14 : vector<64x192xf32> to vector<64x192xbf16>
    %c0_12 = arith.constant 0 : index
    %c0_13 = arith.constant 0 : index
    %16 = vector.load %arg7[%c0_12, %c0_13] : memref<192x128xbf16, #tpu.memory_space<vmem>>, vector<192x128xbf16>
    %cst_14 = arith.constant dense<0.000000e+00> : vector<64x128xf32>
    %17 = tpu.matmul %15, %16, %cst_14 {dimension_numbers = #tpu.dot_dimension_numbers<[1], [0], [0], [1], [0, 0, 1, 1], [], []>} : vector<64x192xbf16>, vector<192x128xbf16>, vector<64x128xf32> -> vector<64x128xf32>
    %c0_15 = arith.constant 0 : index
    %c0_16 = arith.constant 0 : index
    %18 = vector.load %arg8[%c0_15, %c0_16] : memref<1x128xf32, #tpu.memory_space<vmem>>, vector<1x128xf32>
    %19 = vector.broadcast %18 : vector<1x128xf32> to vector<64x128xf32>
    %20 = arith.addf %17, %19 : vector<64x128xf32>
    %c0_17 = arith.constant 0 : index
    %c0_18 = arith.constant 0 : index
    %21 = vector.load %arg9[%c0_17, %c0_18] : memref<1x128xf32, #tpu.memory_space<vmem>>, vector<1x128xf32>
    %22 = vector.broadcast %21 : vector<1x128xf32> to vector<64x128xf32>
    %23 = arith.maximumf %20, %22 : vector<64x128xf32>
    %24 = arith.truncf %23 : vector<64x128xf32> to vector<64x128xbf16>
    %c0_19 = arith.constant 0 : index
    %c0_20 = arith.constant 0 : index
    %25 = vector.load %arg10[%c0_19, %c0_20] : memref<64x128xbf16, #tpu.memory_space<vmem>>, vector<64x128xbf16>
    tpu.vector_store %arg10[%c0_19, %c0_20], %24 {strides = array<i32>} : memref<64x128xbf16, #tpu.memory_space<vmem>>, vector<64x128xbf16>,
    return
  }
  func.func @transform_0(%arg0: i32) -> (i32, i32) {
    %c0_i32 = arith.constant 0 : i32
    %c0_i32_0 = arith.constant 0 : i32
    return %arg0, %c0_i32 : i32, i32
  }
  func.func @transform_1(%arg0: i32) -> (i32, i32) {
    %c0_i32 = arith.constant 0 : i32
    %c0_i32_0 = arith.constant 0 : i32
    return %arg0, %c0_i32 : i32, i32
  }
  func.func @transform_2(%arg0: i32) -> (i32, i32) {
    %c0_i32 = arith.constant 0 : i32
    %c0_i32_0 = arith.constant 0 : i32
    %c0_i32_1 = arith.constant 0 : i32
    return %c0_i32, %c0_i32_0 : i32, i32
  }
  func.func @transform_3(%arg0: i32) -> (i32, i32) {
    %c0_i32 = arith.constant 0 : i32
    %c0_i32_0 = arith.constant 0 : i32
    %c0_i32_1 = arith.constant 0 : i32
    return %c0_i32, %c0_i32_0 : i32, i32
  }
  func.func @transform_4(%arg0: i32) -> (i32, i32) {
    %c0_i32 = arith.constant 0 : i32
    %c0_i32_0 = arith.constant 0 : i32
    %c0_i32_1 = arith.constant 0 : i32
    return %c0_i32, %c0_i32_0 : i32, i32
  }
  func.func @transform_5(%arg0: i32) -> (i32, i32) {
    %c0_i32 = arith.constant 0 : i32
    %c0_i32_0 = arith.constant 0 : i32
    %c0_i32_1 = arith.constant 0 : i32
    return %c0_i32, %c0_i32_0 : i32, i32
  }
  func.func @transform_6(%arg0: i32) -> (i32, i32) {
    %c0_i32 = arith.constant 0 : i32
    %c0_i32_0 = arith.constant 0 : i32
    %c0_i32_1 = arith.constant 0 : i32
    return %c0_i32, %c0_i32_0 : i32, i32
  }
  func.func @transform_7(%arg0: i32) -> (i32, i32) {
    %c0_i32 = arith.constant 0 : i32
    %c0_i32_0 = arith.constant 0 : i32
    %c0_i32_1 = arith.constant 0 : i32
    return %c0_i32, %c0_i32_0 : i32, i32
  }
  func.func @transform_8(%arg0: i32) -> (i32, i32) {
    %c0_i32 = arith.constant 0 : i32
    %c0_i32_0 = arith.constant 0 : i32
    %c0_i32_1 = arith.constant 0 : i32
    return %c0_i32, %c0_i32_0 : i32, i32
  }
  func.func @transform_9(%arg0: i32) -> (i32, i32) {
    %c0_i32 = arith.constant 0 : i32
    %c0_i32_0 = arith.constant 0 : i32
    return %arg0, %c0_i32 : i32, i32
  }
}

</mosaic_0001>

<llo_original>
// kernel: tpu_custom_call.1
$region0: #{tpu_custom_call.1}
  #allocation0 [shape = 'u32[]', space=smem, size = 0x4, offset = 0x4, fixed_abs, tag = 'smem constant byte address 0x4 - core index']
  #allocation1 [shape = 'u32[72,128]{1,0:T(1,128)}', space=vmem, size = 0x9000, scoped, tag = 'internal scratch']
  %s0 = inlined_call_operand.vmem [shape: f32[64,128], index: 0, kind: input, shape index: {}]
  %s1 = inlined_call_operand.vmem [shape: f32[64,32], index: 1, kind: input, shape index: {}]
  %s2 = inlined_call_operand.vmem [shape: bf16[128,192], index: 2, kind: input, shape index: {}]
  %s3 = inlined_call_operand.vmem [shape: bf16[32,192], index: 3, kind: input, shape index: {}]
  %s4 = inlined_call_operand.vmem [shape: f32[1,192], index: 4, kind: input, shape index: {}]
  %s5 = inlined_call_operand.vmem [shape: f32[1,192], index: 5, kind: input, shape index: {}]
  %s6 = inlined_call_operand.vmem [shape: bf16[192,128], index: 6, kind: input, shape index: {}]
  %s7 = inlined_call_operand.vmem [shape: f32[1,128], index: 7, kind: input, shape index: {}]
  %s8 = inlined_call_operand.vmem [shape: f32[1,128], index: 8, kind: input, shape index: {}]
  %s9 = inlined_call_operand.hbm [shape: bf16[64,128], index: 9, kind: output, shape index: {}]
  %s10 = sld [smem:[#allocation0]]
  $region46: #{tpu_custom_call.1} parent=0
    _
  %s12 = ssub.s32 1, %s10
  %s13 = scalar_select 0, %s12, %s10
  $region1: #{tpu_custom_call.1} parent=0
    #allocation2 [shape = 'u8[16384]{0}', space=vmem, size = 0x4000, scoped, tag = 'output window, operand 0, single buffered']
    #allocation3 [shape = 's32[1]{0}', space=sflag, size = 0x4, scoped, tag = 'scoped memory for tpu_custom_call.1']
    %14 = vsyncpa [#allocation3], 0
    // Predicated region
    $region2: #{tpu_custom_call.1} parent=1 // pred_check
      _
    $region3: #{tpu_custom_call.1} parent=1 // pred_check_branch
      %16 = sbr.rel (0) target = $region5
    $region4: #{tpu_custom_call.1} parent=1 // pred_region
      _
    $region5: #{tpu_custom_call.1} parent=1 // pred_fallthru
      _
    // Predicated region
    $region6: #{tpu_custom_call.1} parent=1 // pred_check
      _
    $region7: #{tpu_custom_call.1} parent=1 // pred_check_branch
      %18 = sbr.rel (0) target = $region9
    $region8: #{tpu_custom_call.1} parent=1 // pred_region
      _
    $region9: #{tpu_custom_call.1} parent=1 // pred_fallthru
      _
    // Predicated region
    $region10: #{tpu_custom_call.1} parent=1 // pred_check
      _
    $region11: #{tpu_custom_call.1} parent=1 // pred_check_branch
      %20 = sbr.rel (0) target = $region13
    $region12: #{tpu_custom_call.1} parent=1 // pred_region
      _
    $region13: #{tpu_custom_call.1} parent=1 // pred_fallthru
      _
    // Predicated region
    $region14: #{tpu_custom_call.1} parent=1 // pred_check
      _
    $region15: #{tpu_custom_call.1} parent=1 // pred_check_branch
      %22 = sbr.rel (0) target = $region17
    $region16: #{tpu_custom_call.1} parent=1 // pred_region
      _
    $region17: #{tpu_custom_call.1} parent=1 // pred_fallthru
      _
    // Predicated region
    $region18: #{tpu_custom_call.1} parent=1 // pred_check
      _
    $region19: #{tpu_custom_call.1} parent=1 // pred_check_branch
      %24 = sbr.rel (0) target = $region21
    $region20: #{tpu_custom_call.1} parent=1 // pred_region
      _
    $region21: #{tpu_custom_call.1} parent=1 // pred_fallthru
      _
    // Predicated region
    $region22: #{tpu_custom_call.1} parent=1 // pred_check
      _
    $region23: #{tpu_custom_call.1} parent=1 // pred_check_branch
      %26 = sbr.rel (0) target = $region25
    $region24: #{tpu_custom_call.1} parent=1 // pred_region
      _
    $region25: #{tpu_custom_call.1} parent=1 // pred_fallthru
      _
    // Predicated region
    $region26: #{tpu_custom_call.1} parent=1 // pred_check
      _
    $region27: #{tpu_custom_call.1} parent=1 // pred_check_branch
      %28 = sbr.rel (0) target = $region29
    $region28: #{tpu_custom_call.1} parent=1 // pred_region
      _
    $region29: #{tpu_custom_call.1} parent=1 // pred_fallthru
      _
    // Predicated region
    $region30: #{tpu_custom_call.1} parent=1 // pred_check
      _
    $region31: #{tpu_custom_call.1} parent=1 // pred_check_branch
      %30 = sbr.rel (0) target = $region33
    $region32: #{tpu_custom_call.1} parent=1 // pred_region
      _
    $region33: #{tpu_custom_call.1} parent=1 // pred_fallthru
      _
    // Predicated region
    $region34: #{tpu_custom_call.1} parent=1 // pred_check
      _
    $region35: #{tpu_custom_call.1} parent=1 // pred_check_branch
      %32 = sbr.rel (0) target = $region37
    $region36: #{tpu_custom_call.1} parent=1 // pred_region
      _
    $region37: #{tpu_custom_call.1} parent=1 // pred_fallthru
      _
    %v34 = vld [vmem:[%s0] sm:$0xff]
    %v35 = vld [vmem:[%s0 + $0x8] sm:$0xff]
    %v36 = vld [vmem:[%s0 + $0x10] sm:$0xff]
    %v37 = vld [vmem:[%s0 + $0x18] sm:$0xff]
    %v38 = vld [vmem:[%s0 + $0x20] sm:$0xff]
    %v39 = vld [vmem:[%s0 + $0x28] sm:$0xff]
    %v40 = vld [vmem:[%s0 + $0x30] sm:$0xff]
    %v41 = vld [vmem:[%s0 + $0x38] sm:$0xff]
    %v42 = vpack.c.bf16 %v35, %v34
    %v43 = vpack.c.bf16 %v37, %v36
    %v44 = vpack.c.bf16 %v39, %v38
    %v45 = vpack.c.bf16 %v41, %v40
    %v46 = vld [vmem:[%s1] sm:$0xff]
    %v47 = vld [vmem:[%s1 + $0x8] sm:$0xff]
    %v48 = vld [vmem:[%s1 + $0x10] sm:$0xff]
    %v49 = vld [vmem:[%s1 + $0x18] sm:$0xff]
    %v50 = vld [vmem:[%s1 + $0x20] sm:$0xff]
    %v51 = vld [vmem:[%s1 + $0x28] sm:$0xff]
    %v52 = vld [vmem:[%s1 + $0x30] sm:$0xff]
    %v53 = vld [vmem:[%s1 + $0x38] sm:$0xff]
    %v54 = vpack.c.bf16 %v47, %v46
    %v55 = vpack.c.bf16 %v49, %v48
    %v56 = vpack.c.bf16 %v51, %v50
    %v57 = vpack.c.bf16 %v53, %v52
    %v58 = vld [vmem:[%s2] sm:$0xff]
    %v59 = vld [vmem:[%s2 + $0x8] sm:$0xff]
    %v60 = vld [vmem:[%s2 + $0x10] sm:$0xff]
    %v61 = vld [vmem:[%s2 + $0x18] sm:$0xff]
    %v62 = vld [vmem:[%s2 + $0x20] sm:$0xff]
    %v63 = vld [vmem:[%s2 + $0x28] sm:$0xff]
    %v64 = vld [vmem:[%s2 + $0x30] sm:$0xff]
    %v65 = vld [vmem:[%s2 + $0x38] sm:$0xff]
    %v66 = vld [vmem:[%s2 + $0x40] sm:$0xff]
    %v67 = vld [vmem:[%s2 + $0x48] sm:$0xff]
    %v68 = vld [vmem:[%s2 + $0x50] sm:$0xff]
    %v69 = vld [vmem:[%s2 + $0x58] sm:$0xff]
    %v70 = vld [vmem:[%s2 + $0x60] sm:$0xff]
    %v71 = vld [vmem:[%s2 + $0x68] sm:$0xff]
    %v72 = vld [vmem:[%s2 + $0x70] sm:$0xff]
    %v73 = vld [vmem:[%s2 + $0x78] sm:$0xff]
    %v74 = vld [vmem:[%s3] sm:$0xff]
    %v75 = vld [vmem:[%s3 + $0x8] sm:$0xff]
    %v76 = vld [vmem:[%s3 + $0x10] sm:$0xff]
    %v77 = vld [vmem:[%s3 + $0x18] sm:$0xff]
    %v82 = vunpack.c.l.b16 %v74
    %v83 = vunpack.c.h.b16 %v74
    %v84 = vunpack.c.l.b16 %v75
    %v85 = vunpack.c.h.b16 %v75
    %v86 = vunpack.c.l.b16 %v76
    %v87 = vunpack.c.h.b16 %v76
    %v88 = vunpack.c.l.b16 %v77
    %v89 = vunpack.c.h.b16 %v77
    %v90 = vpack.c.b16 %v84, %v82
    %v91 = vpack.c.b16 %v85, %v83
    %v92 = vpack.c.b16 %v88, %v86
    %v93 = vpack.c.b16 %v89, %v87
    %vm98 = vcmask 261120
    %v100 = vsel %vm98, %v54, 0
    %v103 = vsel %vm98, %v55, 0
    %v106 = vsel %vm98, %v56, 0
    %v109 = vsel %vm98, %v57, 0
    %111 = vmatpush.bf16.msra.mxu0 0
    %112 = vmatpush.bf16.msra.mxu0 0
    %113 = vmatpush.bf16.msra.mxu0 0
    %114 = vmatpush.bf16.msra.mxu0 0
    %115 = vmatpush.bf16.msra.mxu0 0
    %116 = vmatpush.bf16.msra.mxu0 0
    %117 = vmatpush.bf16.msra.mxu0 %v92
    %118 = vmatpush.bf16.msra.mxu0 %v90
    %119 = vmatmul.bf16.gmra.mxu0 %v100
    %v120 = vpop.f32.mrf.mxu0
    %v121 = vadd.f32 0.0, %v120
    %v122 = vpop.f32.mrf.mxu0
    %v123 = vadd.f32 0.0, %v122
    %124 = vmatmul.bf16.gmra.mxu0 %v103
    %v125 = vpop.f32.mrf.mxu0
    %v126 = vadd.f32 0.0, %v125
    %v127 = vpop.f32.mrf.mxu0
    %v128 = vadd.f32 0.0, %v127
    %129 = vmatmul.bf16.gmra.mxu0 %v106
    %v130 = vpop.f32.mrf.mxu0
    %v131 = vadd.f32 0.0, %v130
    %v132 = vpop.f32.mrf.mxu0
    %v133 = vadd.f32 0.0, %v132
    %134 = vmatmul.bf16.gmra.mxu0 %v109
    %v135 = vpop.f32.mrf.mxu0
    %v136 = vadd.f32 0.0, %v135
    %v137 = vpop.f32.mrf.mxu0
    %v138 = vadd.f32 0.0, %v137
    %139 = vdwg.mxu0
    %140 = vmatpush.bf16.msra.mxu0 0
    %141 = vmatpush.bf16.msra.mxu0 0
    %142 = vmatpush.bf16.msra.mxu0 0
    %143 = vmatpush.bf16.msra.mxu0 0
    %144 = vmatpush.bf16.msra.mxu0 0
    %145 = vmatpush.bf16.msra.mxu0 0
    %146 = vmatpush.bf16.msra.mxu0 %v93
    %147 = vmatpush.bf16.msra.mxu0 %v91
    %148 = vmatmul.bf16.gmra.mxu0 %v100
    %v149 = vpop.f32.mrf.mxu0
    %v150 = vadd.f32 0.0, %v149
    %v151 = vpop.f32.mrf.mxu0
    %v152 = vadd.f32 0.0, %v151
    %153 = vmatmul.bf16.gmra.mxu0 %v103
    %v154 = vpop.f32.mrf.mxu0
    %v155 = vadd.f32 0.0, %v154
    %v156 = vpop.f32.mrf.mxu0
    %v157 = vadd.f32 0.0, %v156
    %158 = vmatmul.bf16.gmra.mxu0 %v106
    %v159 = vpop.f32.mrf.mxu0
    %v160 = vadd.f32 0.0, %v159
    %v161 = vpop.f32.mrf.mxu0
    %v162 = vadd.f32 0.0, %v161
    %163 = vmatmul.bf16.gmra.mxu0 %v109
    %v164 = vpop.f32.mrf.mxu0
    %v165 = vadd.f32 0.0, %v164
    %v166 = vpop.f32.mrf.mxu0
    %v167 = vadd.f32 0.0, %v166
    %168 = vdwg.mxu0
    %v185 = vunpack.c.l.b16 %v58
    %v186 = vunpack.c.h.b16 %v58
    %v187 = vunpack.c.l.b16 %v59
    %v188 = vunpack.c.h.b16 %v59
    %v189 = vunpack.c.l.b16 %v60
    %v190 = vunpack.c.h.b16 %v60
    %v191 = vunpack.c.l.b16 %v61
    %v192 = vunpack.c.h.b16 %v61
    %v193 = vunpack.c.l.b16 %v62
    %v194 = vunpack.c.h.b16 %v62
    %v195 = vunpack.c.l.b16 %v63
    %v196 = vunpack.c.h.b16 %v63
    %v197 = vunpack.c.l.b16 %v64
    %v198 = vunpack.c.h.b16 %v64
    %v199 = vunpack.c.l.b16 %v65
    %v200 = vunpack.c.h.b16 %v65
    %v201 = vunpack.c.l.b16 %v66
    %v202 = vunpack.c.h.b16 %v66
    %v203 = vunpack.c.l.b16 %v67
    %v204 = vunpack.c.h.b16 %v67
    %v205 = vunpack.c.l.b16 %v68
    %v206 = vunpack.c.h.b16 %v68
    %v207 = vunpack.c.l.b16 %v69
    %v208 = vunpack.c.h.b16 %v69
    %v209 = vunpack.c.l.b16 %v70
    %v210 = vunpack.c.h.b16 %v70
    %v211 = vunpack.c.l.b16 %v71
    %v212 = vunpack.c.h.b16 %v71
    %v213 = vunpack.c.l.b16 %v72
    %v214 = vunpack.c.h.b16 %v72
    %v215 = vunpack.c.l.b16 %v73
    %v216 = vunpack.c.h.b16 %v73
    %v217 = vpack.c.b16 %v187, %v185
    %v218 = vpack.c.b16 %v188, %v186
    %v219 = vpack.c.b16 %v191, %v189
    %v220 = vpack.c.b16 %v192, %v190
    %v221 = vpack.c.b16 %v195, %v193
    %v222 = vpack.c.b16 %v196, %v194
    %v223 = vpack.c.b16 %v199, %v197
    %v224 = vpack.c.b16 %v200, %v198
    %v225 = vpack.c.b16 %v203, %v201
    %v226 = vpack.c.b16 %v204, %v202
    %v227 = vpack.c.b16 %v207, %v205
    %v228 = vpack.c.b16 %v208, %v206
    %v229 = vpack.c.b16 %v211, %v209
    %v230 = vpack.c.b16 %v212, %v210
    %v231 = vpack.c.b16 %v215, %v213
    %v232 = vpack.c.b16 %v216, %v214
    %249 = vmatpush.bf16.msra.mxu0 %v231
    %250 = vmatpush.bf16.msra.mxu0 %v229
    %251 = vmatpush.bf16.msra.mxu0 %v227
    %252 = vmatpush.bf16.msra.mxu0 %v225
    %253 = vmatpush.bf16.msra.mxu0 %v223
    %254 = vmatpush.bf16.msra.mxu0 %v221
    %255 = vmatpush.bf16.msra.mxu0 %v219
    %256 = vmatpush.bf16.msra.mxu0 %v217
    %257 = vmatmul.bf16.gmra.mxu0 %v42
    %v258 = vpop.f32.mrf.mxu0
    %v259 = vadd.f32 %v121, %v258
    %v260 = vpop.f32.mrf.mxu0
    %v261 = vadd.f32 %v123, %v260
    %262 = vmatmul.bf16.gmra.mxu0 %v43
    %v263 = vpop.f32.mrf.mxu0
    %v264 = vadd.f32 %v126, %v263
    %v265 = vpop.f32.mrf.mxu0
    %v266 = vadd.f32 %v128, %v265
    %267 = vmatmul.bf16.gmra.mxu0 %v44
    %v268 = vpop.f32.mrf.mxu0
    %v269 = vadd.f32 %v131, %v268
    %v270 = vpop.f32.mrf.mxu0
    %v271 = vadd.f32 %v133, %v270
    %272 = vmatmul.bf16.gmra.mxu0 %v45
    %v273 = vpop.f32.mrf.mxu0
    %v274 = vadd.f32 %v136, %v273
    %v275 = vpop.f32.mrf.mxu0
    %v276 = vadd.f32 %v138, %v275
    %277 = vdwg.mxu0
    %278 = vmatpush.bf16.msra.mxu0 %v232
    %279 = vmatpush.bf16.msra.mxu0 %v230
    %280 = vmatpush.bf16.msra.mxu0 %v228
    %281 = vmatpush.bf16.msra.mxu0 %v226
    %282 = vmatpush.bf16.msra.mxu0 %v224
    %283 = vmatpush.bf16.msra.mxu0 %v222
    %284 = vmatpush.bf16.msra.mxu0 %v220
    %285 = vmatpush.bf16.msra.mxu0 %v218
    %286 = vmatmul.bf16.gmra.mxu0 %v42
    %v287 = vpop.f32.mrf.mxu0
    %v288 = vadd.f32 %v150, %v287
    %v289 = vpop.f32.mrf.mxu0
    %v290 = vadd.f32 %v152, %v289
    %291 = vmatmul.bf16.gmra.mxu0 %v43
    %v292 = vpop.f32.mrf.mxu0
    %v293 = vadd.f32 %v155, %v292
    %v294 = vpop.f32.mrf.mxu0
    %v295 = vadd.f32 %v157, %v294
    %296 = vmatmul.bf16.gmra.mxu0 %v44
    %v297 = vpop.f32.mrf.mxu0
    %v298 = vadd.f32 %v160, %v297
    %v299 = vpop.f32.mrf.mxu0
    %v300 = vadd.f32 %v162, %v299
    %301 = vmatmul.bf16.gmra.mxu0 %v45
    %v302 = vpop.f32.mrf.mxu0
    %v303 = vadd.f32 %v165, %v302
    %v304 = vpop.f32.mrf.mxu0
    %v305 = vadd.f32 %v167, %v304
    %306 = vdwg.mxu0
    %v307 = vld [vmem:[%s4] sm:$0x3]
    %v309 = vperm.slane %v307, 0
    %v310 = vperm.slane %v307, 1
    %v313 = vadd.f32 %v259, %v309
    %v314 = vadd.f32 %v288, %v310
    %v315 = vadd.f32 %v261, %v309
    %v316 = vadd.f32 %v290, %v310
    %v317 = vadd.f32 %v264, %v309
    %v318 = vadd.f32 %v293, %v310
    %v319 = vadd.f32 %v266, %v309
    %v320 = vadd.f32 %v295, %v310
    %v321 = vadd.f32 %v269, %v309
    %v322 = vadd.f32 %v298, %v310
    %v323 = vadd.f32 %v271, %v309
    %v324 = vadd.f32 %v300, %v310
    %v325 = vadd.f32 %v274, %v309
    %v326 = vadd.f32 %v303, %v310
    %v327 = vadd.f32 %v276, %v309
    %v328 = vadd.f32 %v305, %v310
    %v329 = vld [vmem:[%s5] sm:$0x3]
    %v331 = vperm.slane %v329, 0
    %v332 = vperm.slane %v329, 1
    %v335 = vmax.f32 %v313, %v331
    %v336 = vmax.f32 %v314, %v332
    %v337 = vmax.f32 %v315, %v331
    %v338 = vmax.f32 %v316, %v332
    %v339 = vmax.f32 %v317, %v331
    %v340 = vmax.f32 %v318, %v332
    %v341 = vmax.f32 %v319, %v331
    %v342 = vmax.f32 %v320, %v332
    %v343 = vmax.f32 %v321, %v331
    %v344 = vmax.f32 %v322, %v332
    %v345 = vmax.f32 %v323, %v331
    %v346 = vmax.f32 %v324, %v332
    %v347 = vmax.f32 %v325, %v331
    %v348 = vmax.f32 %v326, %v332
    %v349 = vmax.f32 %v327, %v331
    %v350 = vmax.f32 %v328, %v332
    %v351 = vpack.c.bf16 %v337, %v335
    %v352 = vpack.c.bf16 %v338, %v336
    %v353 = vpack.c.bf16 %v341, %v339
    %v354 = vpack.c.bf16 %v342, %v340
    %v355 = vpack.c.bf16 %v345, %v343
    %v356 = vpack.c.bf16 %v346, %v344
    %v357 = vpack.c.bf16 %v349, %v347
    %v358 = vpack.c.bf16 %v350, %v348
    %v359 = vld [vmem:[%s6] sm:$0xf]
    %v360 = vld [vmem:[%s6 + $0x4] sm:$0xf]
    %v361 = vld [vmem:[%s6 + $0x8] sm:$0xf]
    %v362 = vld [vmem:[%s6 + $0xc] sm:$0xf]
    %v363 = vld [vmem:[%s6 + $0x10] sm:$0xf]
    %v364 = vld [vmem:[%s6 + $0x14] sm:$0xf]
    %v365 = vld [vmem:[%s6 + $0x18] sm:$0xf]
    %v366 = vld [vmem:[%s6 + $0x1c] sm:$0xf]
    %v367 = vld [vmem:[%s6 + $0x20] sm:$0xf]
    %v368 = vld [vmem:[%s6 + $0x24] sm:$0xf]
    %v369 = vld [vmem:[%s6 + $0x28] sm:$0xf]
    %v370 = vld [vmem:[%s6 + $0x2c] sm:$0xf]
    %v371 = vld [vmem:[%s6 + $0x30] sm:$0xf]
    %v372 = vld [vmem:[%s6 + $0x34] sm:$0xf]
    %v373 = vld [vmem:[%s6 + $0x38] sm:$0xf]
    %v374 = vld [vmem:[%s6 + $0x3c] sm:$0xf]
    %v375 = vld [vmem:[%s6 + $0x40] sm:$0xf]
    %v376 = vld [vmem:[%s6 + $0x44] sm:$0xf]
    %v377 = vld [vmem:[%s6 + $0x48] sm:$0xf]
    %v378 = vld [vmem:[%s6 + $0x4c] sm:$0xf]
    %v379 = vld [vmem:[%s6 + $0x50] sm:$0xf]
    %v380 = vld [vmem:[%s6 + $0x54] sm:$0xf]
    %v381 = vld [vmem:[%s6 + $0x58] sm:$0xf]
    %v382 = vld [vmem:[%s6 + $0x5c] sm:$0xf]
    %v383 = vld [vmem:[%s7] sm:$0x1]
    %v385 = vperm.slane %v383, 0
    %v411 = vunpack.c.l.b16 %v359
    %v412 = vunpack.c.l.b16 %v360
    %v413 = vunpack.c.l.b16 %v361
    %v414 = vunpack.c.l.b16 %v362
    %v415 = vunpack.c.l.b16 %v363
    %v416 = vunpack.c.l.b16 %v364
    %v417 = vunpack.c.l.b16 %v365
    %v418 = vunpack.c.l.b16 %v366
    %v419 = vunpack.c.l.b16 %v367
    %v420 = vunpack.c.l.b16 %v368
    %v421 = vunpack.c.l.b16 %v369
    %v422 = vunpack.c.l.b16 %v370
    %v423 = vunpack.c.l.b16 %v371
    %v424 = vunpack.c.l.b16 %v372
    %v425 = vunpack.c.l.b16 %v373
    %v426 = vunpack.c.l.b16 %v374
    %v427 = vunpack.c.l.b16 %v375
    %v428 = vunpack.c.l.b16 %v376
    %v429 = vunpack.c.l.b16 %v377
    %v430 = vunpack.c.l.b16 %v378
    %v431 = vunpack.c.l.b16 %v379
    %v432 = vunpack.c.l.b16 %v380
    %v433 = vunpack.c.l.b16 %v381
    %v434 = vunpack.c.l.b16 %v382
    %v435 = vpack.c.b16 %v412, %v411
    %v436 = vpack.c.b16 %v414, %v413
    %v437 = vpack.c.b16 %v416, %v415
    %v438 = vpack.c.b16 %v418, %v417
    %v439 = vpack.c.b16 %v420, %v419
    %v440 = vpack.c.b16 %v422, %v421
    %v441 = vpack.c.b16 %v424, %v423
    %v442 = vpack.c.b16 %v426, %v425
    %v443 = vpack.c.b16 %v428, %v427
    %v444 = vpack.c.b16 %v430, %v429
    %v445 = vpack.c.b16 %v432, %v431
    %v446 = vpack.c.b16 %v434, %v433
    %vm459 = vcmask 523264
    %v461 = vsel %vm459, %v352, 0
    %v464 = vsel %vm459, %v354, 0
    %v467 = vsel %vm459, %v356, 0
    %v470 = vsel %vm459, %v358, 0
    %472 = vmatpush.bf16.msra.mxu0 %v442
    %473 = vmatpush.bf16.msra.mxu0 %v441
    %474 = vmatpush.bf16.msra.mxu0 %v440
    %475 = vmatpush.bf16.msra.mxu0 %v439
    %476 = vmatpush.bf16.msra.mxu0 %v438
    %477 = vmatpush.bf16.msra.mxu0 %v437
    %478 = vmatpush.bf16.msra.mxu0 %v436
    %479 = vmatpush.bf16.msra.mxu0 %v435
    %480 = vmatmul.bf16.gmra.mxu0 %v351
    %v481 = vpop.f32.mrf.mxu0
    %v482 = vadd.f32 %v385, %v481
    %v483 = vpop.f32.mrf.mxu0
    %v484 = vadd.f32 %v385, %v483
    %485 = vmatmul.bf16.gmra.mxu0 %v353
    %v486 = vpop.f32.mrf.mxu0
    %v487 = vadd.f32 %v385, %v486
    %v488 = vpop.f32.mrf.mxu0
    %v489 = vadd.f32 %v385, %v488
    %490 = vmatmul.bf16.gmra.mxu0 %v355
    %v491 = vpop.f32.mrf.mxu0
    %v492 = vadd.f32 %v385, %v491
    %v493 = vpop.f32.mrf.mxu0
    %v494 = vadd.f32 %v385, %v493
    %495 = vmatmul.bf16.gmra.mxu0 %v357
    %v496 = vpop.f32.mrf.mxu0
    %v497 = vadd.f32 %v385, %v496
    %v498 = vpop.f32.mrf.mxu0
    %v499 = vadd.f32 %v385, %v498
    %500 = vdwg.mxu0
    %501 = vmatpush.bf16.msra.mxu0 0
    %502 = vmatpush.bf16.msra.mxu0 0
    %503 = vmatpush.bf16.msra.mxu0 0
    %504 = vmatpush.bf16.msra.mxu0 0
    %505 = vmatpush.bf16.msra.mxu0 %v446
    %506 = vmatpush.bf16.msra.mxu0 %v445
    %507 = vmatpush.bf16.msra.mxu0 %v444
    %508 = vmatpush.bf16.msra.mxu0 %v443
    %509 = vmatmul.bf16.gmra.mxu0 %v461
    %v510 = vpop.f32.mrf.mxu0
    %v511 = vadd.f32 %v482, %v510
    %v512 = vpop.f32.mrf.mxu0
    %v513 = vadd.f32 %v484, %v512
    %514 = vmatmul.bf16.gmra.mxu0 %v464
    %v515 = vpop.f32.mrf.mxu0
    %v516 = vadd.f32 %v487, %v515
    %v517 = vpop.f32.mrf.mxu0
    %v518 = vadd.f32 %v489, %v517
    %519 = vmatmul.bf16.gmra.mxu0 %v467
    %v520 = vpop.f32.mrf.mxu0
    %v521 = vadd.f32 %v492, %v520
    %v522 = vpop.f32.mrf.mxu0
    %v523 = vadd.f32 %v494, %v522
    %524 = vmatmul.bf16.gmra.mxu0 %v470
    %v525 = vpop.f32.mrf.mxu0
    %v526 = vadd.f32 %v497, %v525
    %v527 = vpop.f32.mrf.mxu0
    %v528 = vadd.f32 %v499, %v527
    %529 = vdwg.mxu0
    %v530 = vld [vmem:[%s8] sm:$0x1]
    %v532 = vperm.slane %v530, 0
    %v534 = vmax.f32 %v511, %v532
    %v535 = vmax.f32 %v513, %v532
    %v536 = vmax.f32 %v516, %v532
    %v537 = vmax.f32 %v518, %v532
    %v538 = vmax.f32 %v521, %v532
    %v539 = vmax.f32 %v523, %v532
    %v540 = vmax.f32 %v526, %v532
    %v541 = vmax.f32 %v528, %v532
    %v542 = vpack.c.bf16 %v534, %v534
    %v543 = vpack.c.bf16 %v535, %v535
    %v544 = vpack.c.bf16 %v536, %v536
    %v545 = vpack.c.bf16 %v537, %v537
    %v546 = vpack.c.bf16 %v538, %v538
    %v547 = vpack.c.bf16 %v539, %v539
    %v548 = vpack.c.bf16 %v540, %v540
    %v549 = vpack.c.bf16 %v541, %v541
    %550 = vst [vmem:[#allocation2] sm:$0xf] %v542
    %551 = vst [vmem:[#allocation2 + $0x4] sm:$0xf] %v543
    %552 = vst [vmem:[#allocation2 + $0x8] sm:$0xf] %v544
    %553 = vst [vmem:[#allocation2 + $0xc] sm:$0xf] %v545
    %554 = vst [vmem:[#allocation2 + $0x10] sm:$0xf] %v546
    %555 = vst [vmem:[#allocation2 + $0x14] sm:$0xf] %v547
    %556 = vst [vmem:[#allocation2 + $0x18] sm:$0xf] %v548
    %557 = vst [vmem:[#allocation2 + $0x1c] sm:$0xf] %v549
    // Predicated region
    $region38: #{tpu_custom_call.1} parent=1 // pred_check
      _
    $region39: #{tpu_custom_call.1} parent=1 // pred_check_branch
      %559 = sbr.rel (0) target = $region41
    $region40: #{tpu_custom_call.1} parent=1 // pred_region
      %561 = vsyncadd [#allocation3], 0
      %s562 = sshll.u32 [#allocation2], 4
      %s563 = int_to_ptr.vmem [resolvable:$true] %s562
      %s564 = sshll.u32 %s9, 4
      %s565 = int_to_ptr.hbm [resolvable:$true] %s564
      %570 = dma.vmem_to_hbm [thread:$0]  %s563, 512, %s565, [#allocation3], 64, 64, 4
    $region41: #{tpu_custom_call.1} parent=1 // pred_fallthru
      _
    // Predicated region
    $region42: #{tpu_custom_call.1} parent=1 // pred_check
      _
    $region43: #{tpu_custom_call.1} parent=1 // pred_check_branch
      %572 = sbr.rel (0) target = $region45
    $region44: #{tpu_custom_call.1} parent=1 // pred_region
      %574 = dma.done [#allocation3], 512
    $region45: #{tpu_custom_call.1} parent=1 // pred_fallthru
      _
    %575 = vsyncpa [#allocation3], 1

</llo_original>
